<compile_context>
chip_gen: v5e
topology: v5e:2x2
jax: 0.10.0
libtpu: 0.0.40
codegen_flags: <defaults>
</compile_context>

<pallas_src>
import functools
import math

import jax
import jax.numpy as jnp
from jax.experimental import pallas as pl
from jax.experimental.pallas import tpu as pltpu

TOKEN_SELF_ATTN_VALUE = -5e4  # same constant as reformer_pytorch


def _round_up(x, m):
    return ((x + m - 1) // m) * m


def _largest_divisor_leq(n, cap):
    cap = max(1, min(n, cap))
    for d in range(cap, 0, -1):
        if n % d == 0:
            return d
    return 1


# ------------------------------------------------------------------
# Pallas kernels
# ------------------------------------------------------------------

def _linear_kernel(x_ref, w_ref, b_ref, o_ref, acc_ref):
    # Tiled y = x @ W + b, accumulated in f32 VMEM scratch over the K axis.
    @pl.when(pl.program_id(2) == 0)
    def _():
        acc_ref[...] = jnp.zeros_like(acc_ref)

    acc_ref[...] += jnp.dot(x_ref[...], w_ref[...],
                            preferred_element_type=jnp.float32)

    @pl.when(pl.program_id(2) == pl.num_programs(2) - 1)
    def _():
        o_ref[...] = (acc_ref[...] + b_ref[...]).astype(o_ref.dtype)


def linear(x2d, w_in_out, b_row):
    """x2d: (M, K), w_in_out: (K, N) (already (in, out)), b_row: (1, N) f32.

    Returns (M, N) f32. Inputs are cast to bf16 for the MXU, accumulated f32.
    """
    M, K = x2d.shape
    N = w_in_out.shape[1]
    tm = min(256, _round_up(M, 16))
    tn = min(256, _round_up(N, 128))
    tk = min(512, _round_up(K, 128))
    Mp, Kp, Np = _round_up(M, tm), _round_up(K, tk), _round_up(N, tn)

    x = jnp.pad(x2d.astype(jnp.bfloat16), ((0, Mp - M), (0, Kp - K)))
    w = jnp.pad(w_in_out.astype(jnp.bfloat16), ((0, Kp - K), (0, Np - N)))
    b = jnp.pad(b_row.astype(jnp.float32), ((0, 0), (0, Np - N)))

    out = pl.pallas_call(
        _linear_kernel,
        out_shape=jax.ShapeDtypeStruct((Mp, Np), jnp.float32),
        grid=(Mp // tm, Np // tn, Kp // tk),
        in_specs=[
            pl.BlockSpec((tm, tk), lambda i, j, k: (i, k)),
            pl.BlockSpec((tk, tn), lambda i, j, k: (k, j)),
            pl.BlockSpec((1, tn), lambda i, j, k: (0, j)),
        ],
        out_specs=pl.BlockSpec((tm, tn), lambda i, j, k: (i, j)),
        scratch_shapes=[pltpu.VMEM((tm, tn), jnp.float32)],
        compiler_params=pltpu.CompilerParams(
            dimension_semantics=("parallel", "parallel", "arbitrary")),
    )(x, w, b)
    return out[:M, :N]


def _lsh_chunk_attn_kernel(scale, bq_ref, bk_ref, bv_ref, qt_ref, kt_ref,
                           so_ref, lse_ref):
    bq = bq_ref[0]          # (Cb, Wq, D)  bf16 un-normalized sorted queries
    bk = bk_ref[0]          # (Cb, Wk, D)  bf16 pre-normalized look-back keys
    bv = bv_ref[0]          # (Cb, Wk, D)  bf16
    qt = qt_ref[0]          # (Cb, Wq, 1)  int32 original query positions
    kt = kt_ref[0]          # (Cb, 1, Wk)  int32 original key positions

    # batched QK^T on the MXU, f32 accumulation
    dots = jnp.einsum('cqd,ckd->cqk', bq, bk,
                      preferred_element_type=jnp.float32) * scale

    # mask attention of a token to itself (exact-position match)
    dots = jnp.where(qt == kt, jnp.float32(TOKEN_SELF_ATTN_VALUE), dots)

    m = jnp.max(dots, axis=-1, keepdims=True)
    ex = jnp.exp(dots - m)
    denom = jnp.sum(ex, axis=-1, keepdims=True)
    p = ex * pl.reciprocal(denom, approx=True)      # EUP, nearly free
    lse_ref[0] = m + jnp.log(denom)

    so_ref[0] = jnp.einsum('cqk,ckd->cqd', p.astype(bv.dtype), bv,
                           preferred_element_type=jnp.float32)


def lsh_chunk_attention(bq, bk, bv, qt4, kt4):
    """bq: (BH, C, Wq, D) bf16, bk/bv: (BH, C, Wk, D) bf16,
    qt4: (BH, C, Wq, 1) i32, kt4: (BH, C, 1, Wk) i32
    -> (so (BH, C, Wq, D) f32, lse (BH, C, Wq, 1) f32).

    Cb chunks are batched per grid step so each step feeds the MXU ~512 query
    rows and amortizes the per-step grid overhead.
    """
    BH, C, Wq, D = bq.shape
    Wk = bk.shape[2]
    Cb = _largest_divisor_leq(C, max(1, 512 // Wq))
    G = C // Cb
    kernel = functools.partial(_lsh_chunk_attn_kernel, float(D) ** -0.5)
    return pl.pallas_call(
        kernel,
        out_shape=(
            jax.ShapeDtypeStruct((BH, C, Wq, D), jnp.float32),
            jax.ShapeDtypeStruct((BH, C, Wq, 1), jnp.float32),
        ),
        grid=(BH, G),
        in_specs=[
            pl.BlockSpec((1, Cb, Wq, D), lambda b, g: (b, g, 0, 0)),
            pl.BlockSpec((1, Cb, Wk, D), lambda b, g: (b, g, 0, 0)),
            pl.BlockSpec((1, Cb, Wk, D), lambda b, g: (b, g, 0, 0)),
            pl.BlockSpec((1, Cb, Wq, 1), lambda b, g: (b, g, 0, 0)),
            pl.BlockSpec((1, Cb, 1, Wk), lambda b, g: (b, g, 0, 0)),
        ],
        out_specs=(
            pl.BlockSpec((1, Cb, Wq, D), lambda b, g: (b, g, 0, 0)),
            pl.BlockSpec((1, Cb, Wq, 1), lambda b, g: (b, g, 0, 0)),
        ),
        compiler_params=pltpu.CompilerParams(
            dimension_semantics=("parallel", "parallel")),
    )(bq, bk, bv, qt4, kt4)


def _round_combine_kernel(o_ref, lg_ref, out_ref):
    o = o_ref[0]            # (H, Tb, D) f32 per-round attention outputs
    lg = lg_ref[0]          # (H, Tb, 1) f32 per-round logsumexp
    m = jnp.max(lg, axis=0, keepdims=True)
    ex = jnp.exp(lg - m)
    denom = jnp.sum(ex, axis=0, keepdims=True)
    probs = ex * pl.reciprocal(denom, approx=True)   # softmax over hash rounds
    out_ref[0] = jnp.sum(o * probs, axis=0)          # (Tb, D), lane-dense store


def round_combine(o_bhtd, lg_bht1):
    """o: (BH, H, T, D), lg: (BH, H, T, 1) -> (BH, T, D).

    No transposes needed in the caller; the reduction axis (H) is the leading
    in-block dim and the output keeps D on the 128-lane axis. T is tiled.
    """
    BH, H, T, D = o_bhtd.shape
    Tb = _largest_divisor_leq(T, 1024)
    return pl.pallas_call(
        _round_combine_kernel,
        out_shape=jax.ShapeDtypeStruct((BH, T, D), jnp.float32),
        grid=(BH, T // Tb),
        in_specs=[
            pl.BlockSpec((1, H, Tb, D), lambda b, t: (b, 0, t, 0)),
            pl.BlockSpec((1, H, Tb, 1), lambda b, t: (b, 0, t, 0)),
        ],
        out_specs=pl.BlockSpec((1, Tb, D), lambda b, t: (b, t, 0)),
        compiler_params=pltpu.CompilerParams(
            dimension_semantics=("parallel", "parallel")),
    )(o_bhtd, lg_bht1)


# ------------------------------------------------------------------
# LSH attention (JAX glue around the Pallas kernels)
# ------------------------------------------------------------------

def lsh_attention(qk, v, rotations, bucket_size, n_hashes):
    """qk, v: (BH, T, D) f32; rotations: (1, D, n_hashes, n_buckets//2)."""
    BH, T, D = qk.shape
    n_buckets = T // bucket_size

    # --- hash vectors (glue: random rotations + argmax) ---
    rot = jnp.broadcast_to(rotations, (BH,) + rotations.shape[1:])
    rotated = jnp.einsum('btf,bfhi->bhti', qk, rot)
    rotated = jnp.concatenate([rotated, -rotated], axis=-1)     # (BH,H,T,nb)
    buckets = jnp.argmax(rotated, axis=-1).astype(jnp.int32)    # (BH,H,T)
    offsets = (jnp.arange(n_hashes, dtype=jnp.int32) * n_buckets)[None, :, None]
    buckets = (buckets + offsets).reshape(BH, n_hashes * T)

    # --- sort by (bucket, position) ---
    ticker = jnp.arange(n_hashes * T, dtype=jnp.int32)
    buckets_and_t = T * buckets + (ticker % T)[None, :]
    sticker = jnp.argsort(buckets_and_t, axis=-1).astype(jnp.int32)
    undo_sort = jnp.argsort(sticker, axis=-1).astype(jnp.int32)
    st = (sticker % T).astype(jnp.int32)

    HT = n_hashes * T
    gidx = jnp.broadcast_to(st[..., None], (BH, HT, D))
    sqk = jnp.take_along_axis(qk, gidx, axis=1)
    sv = jnp.take_along_axis(v, gidx, axis=1)

    # shared-QK: keys are the L2-normalized queries.  Normalize ONCE here
    # (before look-one-back duplication) using rsqrt instead of sqrt+divide.
    sumsq = jnp.sum(sqk * sqk, axis=-1, keepdims=True)
    sk = sqk * jax.lax.rsqrt(jnp.maximum(sumsq, 1e-24))

    n_chunks = n_hashes * n_buckets
    W = HT // n_chunks                                  # == bucket_size
    bq_t = st.reshape(BH, n_chunks, W)
    bq = sqk.reshape(BH, n_chunks, W, D)
    bk = sk.reshape(BH, n_chunks, W, D)
    bv = sv.reshape(BH, n_chunks, W, D)

    def look_one_back(x):
        extra = jnp.concatenate([x[:, -1:], x[:, :-1]], axis=1)
        return jnp.concatenate([x, extra], axis=2)

    bk = look_one_back(bk)                              # (BH, C, 2W, D)
    bv = look_one_back(bv)
    bkv_t = look_one_back(bq_t)                         # (BH, C, 2W)

    # positions pre-shaped so the kernel mask is pure broadcast (no relayout)
    qt4 = bq_t[..., None].astype(jnp.int32)             # (BH, C, W, 1)
    kt4 = bkv_t[:, :, None, :].astype(jnp.int32)        # (BH, C, 1, 2W)

    so, lse = lsh_chunk_attention(
        bq.astype(jnp.bfloat16), bk.astype(jnp.bfloat16),
        bv.astype(jnp.bfloat16), qt4, kt4)

    so_flat = so.reshape(BH, HT, D)
    lse_flat = lse.reshape(BH, HT)

    # --- unsort ---
    o = jnp.take_along_axis(
        so_flat, jnp.broadcast_to(undo_sort[..., None], (BH, HT, D)), axis=1)
    logits = jnp.take_along_axis(lse_flat, undo_sort, axis=1)

    o = o.reshape(BH, n_hashes, T, D)                   # (BH, H, T, D)
    logits = logits.reshape(BH, n_hashes, T, 1)         # (BH, H, T, 1)

    # --- combine hash rounds (Pallas kernel, no transposes needed) ---
    return round_combine(o, logits)                     # (BH, T, D)


# ------------------------------------------------------------------
# ReformerLayer forward
# ------------------------------------------------------------------

def init_params(key, d_model, n_heads, bucket_size, n_hashes, seq_pad):
    dh = d_model // n_heads
    n_buckets = seq_pad // bucket_size
    k1, k2, k3, k4, k5 = jax.random.split(key, 5)
    scale = 1.0 / math.sqrt(d_model)
    return {
        # Weights stored pre-transposed as (in_features, out_features); a
        # PyTorch nn.Linear checkpoint would be loaded as weight.T.
        "w_qk": jax.random.normal(k1, (d_model, d_model), jnp.float32) * scale,
        "w_v": jax.random.normal(k2, (d_model, d_model), jnp.float32) * scale,
        "w_out": jax.random.normal(k3, (d_model, d_model), jnp.float32) * scale,
        "b_out": jax.random.normal(k4, (d_model,), jnp.float32) * 0.01,
        # LSH random rotations (shared across batch & heads):
        # shape (1, dim_head, n_hashes, n_buckets // 2)
        "rotations": jax.random.normal(
            k5, (1, dh, n_hashes, max(n_buckets // 2, 1)), jnp.float32),
    }


def reformer_layer_forward(params, queries, keys, values, attn_mask, tau, delta,
                           *, n_heads, bucket_size, n_hashes):
    # keys / values / attn_mask / tau / delta are ignored, exactly like the
    # PyTorch ReformerLayer.forward.
    del keys, values, attn_mask, tau, delta
    B, N, C = queries.shape
    h = n_heads
    dh = C // h

    # fit_length: pad sequence length to a multiple of bucket_size * 2
    mlt = bucket_size * 2
    if N % mlt != 0:
        fill = mlt - N % mlt
        x = jnp.concatenate(
            [queries, jnp.zeros((B, fill, C), queries.dtype)], axis=1)
    else:
        x = queries
    T = x.shape[1]

    zeros_bias = jnp.zeros((1, C), jnp.float32)
    x2d = x.reshape(B * T, C)
    qk = linear(x2d, params["w_qk"], zeros_bias).reshape(B, T, C)
    v = linear(x2d, params["w_v"], zeros_bias).reshape(B, T, C)

    def merge_heads(t):   # (B, T, C) -> (B*h, T, dh)
        return t.reshape(B, T, h, dh).transpose(0, 2, 1, 3).reshape(B * h, T, dh)

    out_bh = lsh_attention(merge_heads(qk), merge_heads(v),
                           params["rotations"], bucket_size, n_hashes)

    # split heads: (B*h, T, dh) -> (B, T, C)
    out = out_bh.reshape(B, h, T, dh).transpose(0, 2, 1, 3).reshape(B, T, C)
    out = linear(out.reshape(B * T, C), params["w_out"],
                 params["b_out"][None, :]).reshape(B, T, C)

    # truncate back to the original length, return (out, None)
    return out[:, :N, :], None


# ------------------------------------------------------------------

if __name__ == "__main__":
    B, N, d_model = 2, 6, 32
    n_heads, bucket_size, n_hashes = 4, 4, 4

    key = jax.random.PRNGKey(0)
    kq, kp = jax.random.split(key)
    queries = jax.random.normal(kq, (B, N, d_model), jnp.float32)
    keys = queries
    values = queries

    # padded sequence length the LSH attention will see
    mlt = bucket_size * 2
    seq_pad = N if N % mlt == 0 else N + (mlt - N % mlt)

    params = init_params(kp, d_model, n_heads, bucket_size, n_hashes, seq_pad)

    out, attn = reformer_layer_forward(
        params, queries, keys, values, None, None, None,
        n_heads=n_heads, bucket_size=bucket_size, n_hashes=n_hashes)

    out = jax.block_until_ready(out)
    assert out.shape == (B, N, d_model), out.shape
    assert attn is None
    assert bool(jnp.all(jnp.isfinite(out)))
    print("KERNEL_OK")
</pallas_src>

<mosaic_0001>
module attributes {stable_mosaic.version = 11 : i64} {
  func.func @_linear_kernel(%arg0: i32, %arg1: i32, %arg2: i32, %arg3: memref<16x128xbf16, #tpu.memory_space<vmem>>, %arg4: memref<128x128xbf16, #tpu.memory_space<vmem>>, %arg5: memref<1x128xf32, #tpu.memory_space<vmem>>, %arg6: memref<16x128xf32, #tpu.memory_space<vmem>>, %arg7: memref<16x128xf32, #tpu.memory_space<vmem>>) attributes {dimension_semantics = [#tpu.dimension_semantics<parallel>, #tpu.dimension_semantics<parallel>, #tpu.dimension_semantics<arbitrary>], iteration_bounds = array<i64: 1, 1, 1>, scalar_prefetch = 0 : i64, scratch_operands = 1 : i64, tpu.core_type = #tpu.core_type<tc>, window_params = [{transform_indices = @transform_0, window_bounds = array<i64: 16, 128>}, {transform_indices = @transform_1, window_bounds = array<i64: 128, 128>}, {transform_indices = @transform_2, window_bounds = array<i64: 1, 128>}, {transform_indices = @transform_3, window_bounds = array<i64: 16, 128>}]} {
    %c0_i32 = arith.constant 0 : i32
    %0 = arith.cmpi eq, %arg2, %c0_i32 : i32
    %1 = arith.extui %0 : i1 to i32
    %c0_i32_0 = arith.constant 0 : i32
    %2 = arith.cmpi ne, %1, %c0_i32_0 : i32
    scf.if %2 {
      %cst_10 = arith.constant 0.000000e+00 : f32
      %12 = vector.broadcast %cst_10 : f32 to vector<16x128xf32>
      %c0_11 = arith.constant 0 : index
      %c0_12 = arith.constant 0 : index
      %13 = vector.load %arg7[%c0_11, %c0_12] : memref<16x128xf32, #tpu.memory_space<vmem>>, vector<16x128xf32>
      tpu.vector_store %arg7[%c0_11, %c0_12], %12 {strides = array<i32>} : memref<16x128xf32, #tpu.memory_space<vmem>>, vector<16x128xf32>,
    } else {
    }
    %c0 = arith.constant 0 : index
    %c0_1 = arith.constant 0 : index
    %3 = vector.load %arg7[%c0, %c0_1] : memref<16x128xf32, #tpu.memory_space<vmem>>, vector<16x128xf32>
    %c0_2 = arith.constant 0 : index
    %c0_3 = arith.constant 0 : index
    %4 = vector.load %arg3[%c0_2, %c0_3] : memref<16x128xbf16, #tpu.memory_space<vmem>>, vector<16x128xbf16>
    %c0_4 = arith.constant 0 : index
    %c0_5 = arith.constant 0 : index
    %5 = vector.load %arg4[%c0_4, %c0_5] : memref<128x128xbf16, #tpu.memory_space<vmem>>, vector<128x128xbf16>
    %cst = arith.constant dense<0.000000e+00> : vector<16x128xf32>
    %6 = tpu.matmul %4, %5, %cst {dimension_numbers = #tpu.dot_dimension_numbers<[1], [0], [0], [1], [0, 0, 1, 1], [], []>} : vector<16x128xbf16>, vector<128x128xbf16>, vector<16x128xf32> -> vector<16x128xf32>
    %7 = arith.addf %3, %6 : vector<16x128xf32>
    %c0_6 = arith.constant 0 : index
    %c0_7 = arith.constant 0 : index
    %8 = vector.load %arg7[%c0_6, %c0_7] : memref<16x128xf32, #tpu.memory_space<vmem>>, vector<16x128xf32>
    tpu.vector_store %arg7[%c0_6, %c0_7], %7 {strides = array<i32>} : memref<16x128xf32, #tpu.memory_space<vmem>>, vector<16x128xf32>,
    %c0_i32_8 = arith.constant 0 : i32
    %9 = arith.cmpi eq, %arg2, %c0_i32_8 : i32
    %10 = arith.extui %9 : i1 to i32
    %c0_i32_9 = arith.constant 0 : i32
    %11 = arith.cmpi ne, %10, %c0_i32_9 : i32
    scf.if %11 {
      %c0_10 = arith.constant 0 : index
      %c0_11 = arith.constant 0 : index
      %12 = vector.load %arg7[%c0_10, %c0_11] : memref<16x128xf32, #tpu.memory_space<vmem>>, vector<16x128xf32>
      %c0_12 = arith.constant 0 : index
      %c0_13 = arith.constant 0 : index
      %13 = vector.load %arg5[%c0_12, %c0_13] : memref<1x128xf32, #tpu.memory_space<vmem>>, vector<1x128xf32>
      %14 = vector.broadcast %13 : vector<1x128xf32> to vector<16x128xf32>
      %15 = arith.addf %12, %14 : vector<16x128xf32>
      %c0_14 = arith.constant 0 : index
      %c0_15 = arith.constant 0 : index
      %16 = vector.load %arg6[%c0_14, %c0_15] : memref<16x128xf32, #tpu.memory_space<vmem>>, vector<16x128xf32>
      tpu.vector_store %arg6[%c0_14, %c0_15], %15 {strides = array<i32>} : memref<16x128xf32, #tpu.memory_space<vmem>>, vector<16x128xf32>,
    } else {
    }
    return
  }
  func.func @transform_0(%arg0: i32, %arg1: i32, %arg2: i32) -> (i32, i32) {
    %c0_i32 = arith.constant 0 : i32
    return %arg0, %arg2 : i32, i32
  }
  func.func @transform_1(%arg0: i32, %arg1: i32, %arg2: i32) -> (i32, i32) {
    %c0_i32 = arith.constant 0 : i32
    return %arg2, %arg1 : i32, i32
  }
  func.func @transform_2(%arg0: i32, %arg1: i32, %arg2: i32) -> (i32, i32) {
    %c0_i32 = arith.constant 0 : i32
    %c0_i32_0 = arith.constant 0 : i32
    return %c0_i32, %arg1 : i32, i32
  }
  func.func @transform_3(%arg0: i32, %arg1: i32, %arg2: i32) -> (i32, i32) {
    %c0_i32 = arith.constant 0 : i32
    return %arg0, %arg1 : i32, i32
  }
}

</mosaic_0001>

<llo_original>
// kernel: tpu_custom_call.1
$region0: #{tpu_custom_call.1}
  #allocation0 [shape = 'u32[]', space=smem, size = 0x4, offset = 0x4, fixed_abs, tag = 'smem constant byte address 0x4 - core index']
  #allocation1 [shape = 'u32[72,128]{1,0:T(1,128)}', space=vmem, size = 0x9000, scoped, tag = 'internal scratch']
  #allocation2 [shape = 'f32[16,128]{1,0:T(8,128)}', space=vmem, size = 0x2000, scoped, tag = 'scratch operand']
  %s0 = inlined_call_operand.hbm [shape: bf16[16,128], index: 0, kind: input, shape index: {}]
  %s1 = inlined_call_operand.hbm [shape: bf16[128,128], index: 1, kind: input, shape index: {}]
  %s2 = inlined_call_operand.vmem [shape: f32[1,128], index: 2, kind: input, shape index: {}]
  %s3 = inlined_call_operand.hbm [shape: f32[16,128], index: 3, kind: output, shape index: {}]
  %s4 = sld [smem:[#allocation0]]
  $region38: #{tpu_custom_call.1} parent=0
    _
  %s6 = ssub.s32 1, %s4
  %s7 = scalar_select 0, %s6, %s4
  $region1: #{tpu_custom_call.1} parent=0
    #allocation3 [shape = 'u8[4096]{0}', space=vmem, size = 0x1000, scoped, tag = 'input window, operand 0, single buffered']
    #allocation4 [shape = 's32[1]{0}', space=sflag, size = 0x4, scoped, tag = 'scoped memory for tpu_custom_call.1']
    #allocation5 [shape = 's32[1]{0}', space=sflag, size = 0x4, scoped, tag = 'scoped memory for tpu_custom_call.1']
    #allocation6 [shape = 'u8[32768]{0}', space=vmem, size = 0x8000, scoped, tag = 'input window, operand 1, single buffered']
    #allocation7 [shape = 's32[1]{0}', space=sflag, size = 0x4, scoped, tag = 'scoped memory for tpu_custom_call.1']
    #allocation8 [shape = 'u8[8192]{0}', space=vmem, size = 0x2000, scoped, tag = 'output window, operand 0, single buffered']
    %8 = vsyncpa [#allocation4], 0
    %9 = vsyncpa [#allocation7], 0
    %10 = vsyncpa [#allocation5], 0
    // Predicated region
    $region2: #{tpu_custom_call.1} parent=1 // pred_check
      _
    $region3: #{tpu_custom_call.1} parent=1 // pred_check_branch
      %12 = sbr.rel (0) target = $region5
    $region4: #{tpu_custom_call.1} parent=1 // pred_region
      %14 = vsyncadd [#allocation4], 0
      %s15 = sshll.u32 %s0, 4
      %s16 = int_to_ptr.hbm [resolvable:$true] %s15
      %s17 = sshll.u32 [#allocation3], 4
      %s18 = int_to_ptr.vmem [resolvable:$true] %s17
      %23 = dma.hbm_to_vmem [thread:$0]  %s16, 128, %s18, [#allocation4], 64, 64, 4
    $region5: #{tpu_custom_call.1} parent=1 // pred_fallthru
      _
    // Predicated region
    $region6: #{tpu_custom_call.1} parent=1 // pred_check
      _
    $region7: #{tpu_custom_call.1} parent=1 // pred_check_branch
      %25 = sbr.rel (0) target = $region9
    $region8: #{tpu_custom_call.1} parent=1 // pred_region
      %27 = vsyncadd [#allocation7], 0
      %s28 = sshll.u32 %s1, 4
      %s29 = int_to_ptr.hbm [resolvable:$true] %s28
      %s30 = sshll.u32 [#allocation6], 4
      %s31 = int_to_ptr.vmem [resolvable:$true] %s30
      %36 = dma.hbm_to_vmem [thread:$0]  %s29, 1024, %s31, [#allocation7], 64, 64, 4
    $region9: #{tpu_custom_call.1} parent=1 // pred_fallthru
      _
    // Predicated region
    $region10: #{tpu_custom_call.1} parent=1 // pred_check
      _
    $region11: #{tpu_custom_call.1} parent=1 // pred_check_branch
      %38 = sbr.rel (0) target = $region13
    $region12: #{tpu_custom_call.1} parent=1 // pred_region
      _
    $region13: #{tpu_custom_call.1} parent=1 // pred_fallthru
      _
    // Predicated region
    $region14: #{tpu_custom_call.1} parent=1 // pred_check
      _
    $region15: #{tpu_custom_call.1} parent=1 // pred_check_branch
      %40 = sbr.rel (0) target = $region17
    $region16: #{tpu_custom_call.1} parent=1 // pred_region
      %42 = dma.done [#allocation4], 128
    $region17: #{tpu_custom_call.1} parent=1 // pred_fallthru
      _
    // Predicated region
    $region18: #{tpu_custom_call.1} parent=1 // pred_check
      _
    $region19: #{tpu_custom_call.1} parent=1 // pred_check_branch
      %44 = sbr.rel (0) target = $region21
    $region20: #{tpu_custom_call.1} parent=1 // pred_region
      %46 = dma.done [#allocation7], 1024
    $region21: #{tpu_custom_call.1} parent=1 // pred_fallthru
      _
    %p47 = scmp.eq.s32.totalorder 0, 0
    // Predicated region
    $region22: #{tpu_custom_call.1} parent=1 // pred_check
      %p48 = pneg %p47
    $region23: #{tpu_custom_call.1} parent=1 // pred_check_branch
      %50 = sbr.rel (%p48) target = $region25
    $region24: #{tpu_custom_call.1} parent=1 // pred_region
      %51 = vst [vmem:[#allocation2] sm:$0xff] 0.0
      %52 = vst [vmem:[#allocation2 + $0x8] sm:$0xff] 0.0
    $region25: #{tpu_custom_call.1} parent=1 // pred_fallthru
      _
    %v53 = vld [vmem:[#allocation2] sm:$0xff]
    %v54 = vld [vmem:[#allocation2 + $0x8] sm:$0xff]
    %v55 = vld [vmem:[#allocation3] sm:$0xf]
    %v56 = vld [vmem:[#allocation3 + $0x4] sm:$0xf]
    %v57 = vld [vmem:[#allocation6] sm:$0xf]
    %v58 = vld [vmem:[#allocation6 + $0x4] sm:$0xf]
    %v59 = vld [vmem:[#allocation6 + $0x8] sm:$0xf]
    %v60 = vld [vmem:[#allocation6 + $0xc] sm:$0xf]
    %v61 = vld [vmem:[#allocation6 + $0x10] sm:$0xf]
    %v62 = vld [vmem:[#allocation6 + $0x14] sm:$0xf]
    %v63 = vld [vmem:[#allocation6 + $0x18] sm:$0xf]
    %v64 = vld [vmem:[#allocation6 + $0x1c] sm:$0xf]
    %v65 = vld [vmem:[#allocation6 + $0x20] sm:$0xf]
    %v66 = vld [vmem:[#allocation6 + $0x24] sm:$0xf]
    %v67 = vld [vmem:[#allocation6 + $0x28] sm:$0xf]
    %v68 = vld [vmem:[#allocation6 + $0x2c] sm:$0xf]
    %v69 = vld [vmem:[#allocation6 + $0x30] sm:$0xf]
    %v70 = vld [vmem:[#allocation6 + $0x34] sm:$0xf]
    %v71 = vld [vmem:[#allocation6 + $0x38] sm:$0xf]
    %v72 = vld [vmem:[#allocation6 + $0x3c] sm:$0xf]
    %v75 = vunpack.c.l.b16 %v55
    %v76 = vunpack.c.l.b16 %v56
    %v77 = vpack.c.b16 %v76, %v75
    %v95 = vunpack.c.l.b16 %v57
    %v96 = vunpack.c.l.b16 %v58
    %v97 = vunpack.c.l.b16 %v59
    %v98 = vunpack.c.l.b16 %v60
    %v99 = vunpack.c.l.b16 %v61
    %v100 = vunpack.c.l.b16 %v62
    %v101 = vunpack.c.l.b16 %v63
    %v102 = vunpack.c.l.b16 %v64
    %v103 = vunpack.c.l.b16 %v65
    %v104 = vunpack.c.l.b16 %v66
    %v105 = vunpack.c.l.b16 %v67
    %v106 = vunpack.c.l.b16 %v68
    %v107 = vunpack.c.l.b16 %v69
    %v108 = vunpack.c.l.b16 %v70
    %v109 = vunpack.c.l.b16 %v71
    %v110 = vunpack.c.l.b16 %v72
    %v111 = vpack.c.b16 %v96, %v95
    %v112 = vpack.c.b16 %v98, %v97
    %v113 = vpack.c.b16 %v100, %v99
    %v114 = vpack.c.b16 %v102, %v101
    %v115 = vpack.c.b16 %v104, %v103
    %v116 = vpack.c.b16 %v106, %v105
    %v117 = vpack.c.b16 %v108, %v107
    %v118 = vpack.c.b16 %v110, %v109
    %127 = vmatpush.bf16.msra.mxu0 %v118
    %128 = vmatpush.bf16.msra.mxu0 %v117
    %129 = vmatpush.bf16.msra.mxu0 %v116
    %130 = vmatpush.bf16.msra.mxu0 %v115
    %131 = vmatpush.bf16.msra.mxu0 %v114
    %132 = vmatpush.bf16.msra.mxu0 %v113
    %133 = vmatpush.bf16.msra.mxu0 %v112
    %134 = vmatpush.bf16.msra.mxu0 %v111
    %135 = vmatmul.bf16.gmra.mxu0 %v77
    %v136 = vpop.f32.mrf.mxu0
    %v137 = vadd.f32 0.0, %v136
    %v138 = vpop.f32.mrf.mxu0
    %v139 = vadd.f32 0.0, %v138
    %140 = vdwg.mxu0
    %v141 = vadd.f32 %v53, %v137
    %v142 = vadd.f32 %v54, %v139
    %143 = vst [vmem:[#allocation2] sm:$0xff] %v141
    %144 = vst [vmem:[#allocation2 + $0x8] sm:$0xff] %v142
    // Predicated region
    $region26: #{tpu_custom_call.1} parent=1 // pred_check
      %p145 = pneg %p47
    $region27: #{tpu_custom_call.1} parent=1 // pred_check_branch
      %147 = sbr.rel (%p145) target = $region29
    $region28: #{tpu_custom_call.1} parent=1 // pred_region
      %v148 = vld [vmem:[#allocation2] sm:$0xff]
      %v149 = vld [vmem:[#allocation2 + $0x8] sm:$0xff]
      %v150 = vld [vmem:[%s2] sm:$0x1]
      %v152 = vperm.slane %v150, 0
      %v154 = vadd.f32 %v148, %v152
      %v155 = vadd.f32 %v149, %v152
      %156 = vst [vmem:[#allocation8] sm:$0xff] %v154
      %157 = vst [vmem:[#allocation8 + $0x8] sm:$0xff] %v155
    $region29: #{tpu_custom_call.1} parent=1 // pred_fallthru
      _
    // Predicated region
    $region30: #{tpu_custom_call.1} parent=1 // pred_check
      _
    $region31: #{tpu_custom_call.1} parent=1 // pred_check_branch
      %159 = sbr.rel (0) target = $region33
    $region32: #{tpu_custom_call.1} parent=1 // pred_region
      %161 = vsyncadd [#allocation5], 0
      %s162 = sshll.u32 [#allocation8], 4
      %s163 = int_to_ptr.vmem [resolvable:$true] %s162
      %s164 = sshll.u32 %s3, 4
      %s165 = int_to_ptr.hbm [resolvable:$true] %s164
      %170 = dma.vmem_to_hbm [thread:$0]  %s163, 256, %s165, [#allocation5], 128, 128, 8
    $region33: #{tpu_custom_call.1} parent=1 // pred_fallthru
      _
    // Predicated region
    $region34: #{tpu_custom_call.1} parent=1 // pred_check
      _
    $region35: #{tpu_custom_call.1} parent=1 // pred_check_branch
      %172 = sbr.rel (0) target = $region37
    $region36: #{tpu_custom_call.1} parent=1 // pred_region
      %174 = dma.done [#allocation5], 256
    $region37: #{tpu_custom_call.1} parent=1 // pred_fallthru
      _
    %175 = vsyncpa [#allocation4], 1
    %176 = vsyncpa [#allocation7], 1
    %177 = vsyncpa [#allocation5], 1

</llo_original>
